<compile_context>
chip_gen: v5e
topology: v5e:2x2
jax: 0.10.0
libtpu: 0.0.40
codegen_flags: <defaults>
</compile_context>

<pallas_src>
import jax
import jax.numpy as jnp
from jax.experimental import pallas as pl
from jax.experimental.pallas import tpu as pltpu

_BN_EPS = 1e-5  # torch BatchNorm2d default


def _round_up(v, m):
    return (v + m - 1) // m * m


def _pick_row_tile(rows):
    """Row tile: sublane-aligned, >=2 grid steps when possible (v7x megacore),
    capped at 512 rows so double-buffered blocks stay tiny in VMEM."""
    if rows <= 16:
        return _round_up(rows, 8)
    return min(512, _round_up((rows + 1) // 2, 8))


def _conv_bn_elu_kernel(x_ref, w_ref, scale_ref, shift_ref, o_ref):
    """One im2col row tile: (TR, K) @ (K, C_out) + folded BatchNorm + ELU.

    x_ref:     (TR, K)       im2col rows (K = 9*C_in), compute dtype
    w_ref:     (K, C_out)    conv weights folded to 2-D, compute dtype
    scale_ref: (1, C_out)    folded BN scale (gamma / sqrt(var+eps)), f32
    shift_ref: (1, C_out)    folded BN shift (includes conv bias), f32
    o_ref:     (TR, C_out)   output activations
    """
    acc = jnp.dot(x_ref[...], w_ref[...], preferred_element_type=jnp.float32)
    y = acc * scale_ref[...] + shift_ref[...]
    # ELU (alpha=1); exp is evaluated on clamped values so the untaken branch
    # never overflows.
    y = jnp.where(y > 0.0, y, jnp.exp(jnp.minimum(y, 0.0)) - 1.0)
    o_ref[...] = y.astype(o_ref.dtype)


def conv_block_forward_nhwc(x_nhwc, params, *, eps=_BN_EPS,
                            compute_dtype=jnp.float32):
    """NHWC entry point (preferred when chaining blocks): (N,H,W,Cin)->(N,H,W,Cout)."""
    weight, bias, gamma, beta, run_mean, run_var = params
    N, H, W, C_in = x_nhwc.shape
    C_out = weight.shape[0]
    assert H >= 2 and W >= 2, "ReflectionPad2d(1) requires H, W >= 2"

    # Reflection pad (== nn.ReflectionPad2d(1)) then im2col: pack the 3x3 taps
    # into the contraction dim so the kernel does a single MXU matmul per tile.
    xh = jnp.pad(x_nhwc, ((0, 0), (1, 1), (1, 1), (0, 0)), mode="reflect")
    taps = [xh[:, ky:ky + H, kx:kx + W, :] for ky in range(3) for kx in range(3)]
    K = 9 * C_in
    rows = N * H * W
    xc = jnp.concatenate(taps, axis=-1).reshape(rows, K)

    # (C_out, C_in, 3, 3) -> (3, 3, C_in, C_out) -> (K, C_out); (ky, kx, ci)
    # order matches the im2col concatenation above.
    w2 = jnp.transpose(weight, (2, 3, 1, 0)).reshape(K, C_out)

    # Fold conv bias + eval-mode BatchNorm2d:  BN(conv(x)+b) = scale*conv(x)+shift
    scale = gamma * jax.lax.rsqrt(run_var + eps)
    shift = beta + (bias - run_mean) * scale

    tile = _pick_row_tile(rows)
    rows_p = _round_up(rows, tile)
    if rows_p != rows:
        xc = jnp.pad(xc, ((0, rows_p - rows), (0, 0)))

    xc = xc.astype(compute_dtype)
    w2 = w2.astype(compute_dtype)
    out_dtype = x_nhwc.dtype

    grid = (rows_p // tile,)
    cost = pl.CostEstimate(  # true (unpadded) dims only — advisory
        flops=2 * rows * K * C_out,
        transcendentals=rows * C_out,
        bytes_accessed=int(xc.size * xc.dtype.itemsize
                           + w2.size * w2.dtype.itemsize
                           + rows_p * C_out * jnp.dtype(out_dtype).itemsize),
    )

    out = pl.pallas_call(
        _conv_bn_elu_kernel,
        out_shape=jax.ShapeDtypeStruct((rows_p, C_out), out_dtype),
        grid=grid,
        in_specs=[
            pl.BlockSpec((tile, K), lambda r: (r, 0)),     # im2col rows
            pl.BlockSpec((K, C_out), lambda r: (0, 0)),    # folded weights
            pl.BlockSpec((1, C_out), lambda r: (0, 0)),    # BN scale
            pl.BlockSpec((1, C_out), lambda r: (0, 0)),    # BN shift (+bias)
        ],
        out_specs=pl.BlockSpec((tile, C_out), lambda r: (r, 0)),
        compiler_params=pltpu.CompilerParams(
            dimension_semantics=("parallel",)),
        cost_estimate=cost,
    )(xc, w2,
      scale.reshape(1, C_out).astype(jnp.float32),
      shift.reshape(1, C_out).astype(jnp.float32))

    return out[:rows].reshape(N, H, W, C_out)


def conv_block_forward(x_nchw, params, *, eps=_BN_EPS,
                       compute_dtype=jnp.float32):
    """NCHW compatibility wrapper matching the PyTorch module interface."""
    x = jnp.transpose(x_nchw, (0, 2, 3, 1))                  # NCHW -> NHWC
    y = conv_block_forward_nhwc(x, params, eps=eps, compute_dtype=compute_dtype)
    return jnp.transpose(y, (0, 3, 1, 2))                    # NHWC -> NCHW


class ConvBlock:
    """JAX/Pallas port of ConvBlock: ReflectionPad2d(1) -> Conv3x3 -> BatchNorm2d -> ELU."""
    # TODO(synk): training-mode BatchNorm2d (batch statistics + running-stat
    # updates) is not computed in-kernel; eval-mode running stats are folded
    # into a per-channel scale/shift.

    def __init__(self, in_channels, out_channels, key):
        kw, kb, kg, kbeta, km, kv = jax.random.split(key, 6)
        fan_in = in_channels * 9
        bound = 1.0 / (fan_in ** 0.5)             # torch Conv2d default init range
        weight = jax.random.uniform(kw, (out_channels, in_channels, 3, 3),
                                    jnp.float32, -bound, bound)
        bias = jax.random.uniform(kb, (out_channels,), jnp.float32, -bound, bound)
        # Non-trivial BN parameters / running stats to exercise the folded path.
        gamma = 1.0 + 0.1 * jax.random.normal(kg, (out_channels,), jnp.float32)
        beta = 0.1 * jax.random.normal(kbeta, (out_channels,), jnp.float32)
        run_mean = 0.1 * jax.random.normal(km, (out_channels,), jnp.float32)
        run_var = 1.0 + 0.1 * jnp.abs(jax.random.normal(kv, (out_channels,), jnp.float32))
        self.params = (weight, bias, gamma, beta, run_mean, run_var)

    def __call__(self, x):
        return conv_block_forward(x, self.params)


def _reference_conv_block(x_nchw, params, eps=_BN_EPS):
    """Pure-JAX reference: reflection pad -> 3x3 conv -> BatchNorm (eval) -> ELU."""
    weight, bias, gamma, beta, run_mean, run_var = params
    N, C_in, H, W = x_nchw.shape
    xh = jnp.transpose(x_nchw, (0, 2, 3, 1))
    xh = jnp.pad(xh, ((0, 0), (1, 1), (1, 1), (0, 0)), mode="reflect")
    w_hwio = jnp.transpose(weight, (2, 3, 1, 0))           # (3, 3, Cin, Cout)
    y = jnp.zeros((N, H, W, weight.shape[0]), jnp.float32)
    for ky in range(3):
        for kx in range(3):
            y = y + jnp.einsum("nhwc,cd->nhwd",
                               xh[:, ky:ky + H, kx:kx + W, :], w_hwio[ky, kx])
    y = y + bias
    y = (y - run_mean) * jax.lax.rsqrt(run_var + eps) * gamma + beta
    y = jax.nn.elu(y)
    return jnp.transpose(y, (0, 3, 1, 2))


if __name__ == "__main__":
    key = jax.random.PRNGKey(0)
    k_x, k_p = jax.random.split(key)

    # Small shapes consistent with the module: (batch, in_channels, H, W).
    batch, in_channels, out_channels, H, W = 2, 4, 8, 16, 16
    x = jax.random.normal(k_x, (batch, in_channels, H, W), jnp.float32)

    block = ConvBlock(in_channels, out_channels, k_p)
    out = jax.block_until_ready(block(x))

    ref = _reference_conv_block(x, block.params)
    assert out.shape == (batch, out_channels, H, W)
    max_err = float(jnp.max(jnp.abs(out - ref)))
    assert jnp.allclose(out, ref, atol=1e-5, rtol=1e-5), f"max abs err = {max_err}"

    print("KERNEL_OK")
</pallas_src>

<mosaic_0001>
module attributes {stable_mosaic.version = 11 : i64} {
  func.func @_conv_bn_elu_kernel(%arg0: i32, %arg1: memref<256x36xf32, #tpu.memory_space<vmem>>, %arg2: memref<36x8xf32, #tpu.memory_space<vmem>>, %arg3: memref<1x8xf32, #tpu.memory_space<vmem>>, %arg4: memref<1x8xf32, #tpu.memory_space<vmem>>, %arg5: memref<256x8xf32, #tpu.memory_space<vmem>>) attributes {dimension_semantics = [#tpu.dimension_semantics<parallel>], iteration_bounds = array<i64: 2>, scalar_prefetch = 0 : i64, scratch_operands = 0 : i64, tpu.core_type = #tpu.core_type<tc>, window_params = [{transform_indices = @transform_0, window_bounds = array<i64: 256, 36>}, {pipeline_mode = #tpu.pipeline_mode<synchronous>, transform_indices = @transform_1, window_bounds = array<i64: 36, 8>}, {pipeline_mode = #tpu.pipeline_mode<synchronous>, transform_indices = @transform_2, window_bounds = array<i64: 1, 8>}, {pipeline_mode = #tpu.pipeline_mode<synchronous>, transform_indices = @transform_3, window_bounds = array<i64: 1, 8>}, {transform_indices = @transform_4, window_bounds = array<i64: 256, 8>}]} {
    %c0 = arith.constant 0 : index
    %c0_0 = arith.constant 0 : index
    %0 = vector.load %arg1[%c0, %c0_0] : memref<256x36xf32, #tpu.memory_space<vmem>>, vector<256x36xf32>
    %c0_1 = arith.constant 0 : index
    %c0_2 = arith.constant 0 : index
    %1 = vector.load %arg2[%c0_1, %c0_2] : memref<36x8xf32, #tpu.memory_space<vmem>>, vector<36x8xf32>
    %cst = arith.constant dense<0.000000e+00> : vector<256x8xf32>
    %2 = tpu.matmul %0, %1, %cst {dimension_numbers = #tpu.dot_dimension_numbers<[1], [0], [0], [1], [0, 0, 1, 1], [], []>} : vector<256x36xf32>, vector<36x8xf32>, vector<256x8xf32> -> vector<256x8xf32>
    %c0_3 = arith.constant 0 : index
    %c0_4 = arith.constant 0 : index
    %3 = vector.load %arg3[%c0_3, %c0_4] : memref<1x8xf32, #tpu.memory_space<vmem>>, vector<1x8xf32>
    %4 = vector.broadcast %3 : vector<1x8xf32> to vector<256x8xf32>
    %5 = arith.mulf %2, %4 : vector<256x8xf32>
    %c0_5 = arith.constant 0 : index
    %c0_6 = arith.constant 0 : index
    %6 = vector.load %arg4[%c0_5, %c0_6] : memref<1x8xf32, #tpu.memory_space<vmem>>, vector<1x8xf32>
    %7 = vector.broadcast %6 : vector<1x8xf32> to vector<256x8xf32>
    %8 = arith.addf %5, %7 : vector<256x8xf32>
    %cst_7 = arith.constant 0.000000e+00 : f32
    %9 = vector.broadcast %cst_7 : f32 to vector<256x8xf32>
    %10 = arith.cmpf ogt, %8, %9 : vector<256x8xf32>
    %cst_8 = arith.constant 0.000000e+00 : f32
    %11 = vector.broadcast %cst_8 : f32 to vector<256x8xf32>
    %12 = arith.minimumf %8, %11 : vector<256x8xf32>
    %13 = math.exp %12 : vector<256x8xf32>
    %cst_9 = arith.constant 1.000000e+00 : f32
    %14 = vector.broadcast %cst_9 : f32 to vector<256x8xf32>
    %15 = arith.subf %13, %14 : vector<256x8xf32>
    %16 = arith.select %10, %8, %15 : vector<256x8xi1>, vector<256x8xf32>
    %c0_10 = arith.constant 0 : index
    %c0_11 = arith.constant 0 : index
    %17 = vector.load %arg5[%c0_10, %c0_11] : memref<256x8xf32, #tpu.memory_space<vmem>>, vector<256x8xf32>
    tpu.vector_store %arg5[%c0_10, %c0_11], %16 {strides = array<i32>} : memref<256x8xf32, #tpu.memory_space<vmem>>, vector<256x8xf32>,
    return
  }
  func.func @transform_0(%arg0: i32) -> (i32, i32) {
    %c0_i32 = arith.constant 0 : i32
    %c0_i32_0 = arith.constant 0 : i32
    return %arg0, %c0_i32 : i32, i32
  }
  func.func @transform_1(%arg0: i32) -> (i32, i32) {
    %c0_i32 = arith.constant 0 : i32
    %c0_i32_0 = arith.constant 0 : i32
    %c0_i32_1 = arith.constant 0 : i32
    return %c0_i32, %c0_i32_0 : i32, i32
  }
  func.func @transform_2(%arg0: i32) -> (i32, i32) {
    %c0_i32 = arith.constant 0 : i32
    %c0_i32_0 = arith.constant 0 : i32
    %c0_i32_1 = arith.constant 0 : i32
    return %c0_i32, %c0_i32_0 : i32, i32
  }
  func.func @transform_3(%arg0: i32) -> (i32, i32) {
    %c0_i32 = arith.constant 0 : i32
    %c0_i32_0 = arith.constant 0 : i32
    %c0_i32_1 = arith.constant 0 : i32
    return %c0_i32, %c0_i32_0 : i32, i32
  }
  func.func @transform_4(%arg0: i32) -> (i32, i32) {
    %c0_i32 = arith.constant 0 : i32
    %c0_i32_0 = arith.constant 0 : i32
    return %arg0, %c0_i32 : i32, i32
  }
}

</mosaic_0001>

<llo_original>
// kernel: tpu_custom_call.1
$region0: #{tpu_custom_call.1}
  #allocation0 [shape = 'u32[]', space=smem, size = 0x4, offset = 0x4, fixed_abs, tag = 'smem constant byte address 0x4 - core index']
  #allocation1 [shape = 'u32[72,128]{1,0:T(1,128)}', space=vmem, size = 0x9000, scoped, tag = 'internal scratch']
  %s0 = inlined_call_operand.vmem [shape: f32[512,36], index: 0, kind: input, shape index: {}]
  %s1 = inlined_call_operand.vmem [shape: f32[36,8], index: 1, kind: input, shape index: {}]
  %s2 = inlined_call_operand.vmem [shape: f32[1,8], index: 2, kind: input, shape index: {}]
  %s3 = inlined_call_operand.vmem [shape: f32[1,8], index: 3, kind: input, shape index: {}]
  %s4 = inlined_call_operand.vmem [shape: f32[512,8], index: 4, kind: output, shape index: {}]
  %s5 = sld [smem:[#allocation0]]
  $region49: #{tpu_custom_call.1} parent=0
    _
  %s7 = ssub.s32 1, %s5
  %s8 = scalar_select 0, %s7, %s5
  loop: start=0, step=1, limit=4
  $region2: #{tpu_custom_call.1} parent=0 // loop_pre_header
    _
  $region3: #{tpu_custom_call.1} parent=0 // loop_header
    %s10 = sphi 0, %s14
    %p11 = scmp.ge.s32.totalorder %s10, 4
    %s20 = sphi 0, %s22
    %s23 = sphi 0, %s20
    %s24 = sphi 0, %s23
    %s40 = sphi 0, %s24
    %s44 = sphi 0, %s44
    %s46 = sphi 0, %s44
    %s47 = sphi 0, %s46
    %s61 = sphi 0, %s47
    %s65 = sphi 0, %s65
    %s67 = sphi 0, %s65
    %s68 = sphi 0, %s67
    %s82 = sphi 0, %s68
    %s86 = sphi 0, %s86
    %s88 = sphi 0, %s86
    %s89 = sphi 0, %s88
    %s103 = sphi 0, %s89
    %s109 = sphi 0, %s111
    %s112 = sphi 0, %s109
    %s113 = sphi 0, %s112
    %s129 = sphi 0, %s113
  $region4: #{tpu_custom_call.1} parent=0 // loop_header_branch
    %13 = sbr.rel (%p11) target = $region8
  $region5: #{tpu_custom_call.1} parent=0 // loop_body
    %s15 = ssub.s32 %s10, 1
    %s16 = ssub.s32 %s10, 2
    %s17 = sadd.s32 %s10, 1
    %s18 = ssub.s32 %s10, %s17
    %p19 = scmp.eq.s32.totalorder %s18, 0
    %s21 = sadd.s32 %s20, 1
    %s22 = scalar_select %p19, %s20, %s21
    %p25 = pneg %p19
    %p26 = scmp.eq.s32.totalorder %s10, 1
    %p27 = por %p25, %p26
    %p28 = scmp.ne.s32.totalorder %s20, %s23
    %p29 = scmp.eq.s32.totalorder %s10, 0
    %p30 = por %p28, %p29
    %p31 = scmp.ne.s32.totalorder %s20, %s23
    %p32 = scmp.eq.s32.totalorder %s15, 1
    %p33 = por %p31, %p32
    %p34 = scmp.ne.s32.totalorder %s23, %s24
    %p35 = scmp.eq.s32.totalorder %s15, 0
    %p36 = por %p34, %p35
    %p37 = scmp.ne.s32.totalorder %s23, %s24
    %p38 = scmp.eq.s32.totalorder %s16, 1
    %p39 = por %p37, %p38
    %p41 = scmp.ne.s32.totalorder %s24, %s40
    %p42 = scmp.eq.s32.totalorder %s16, 0
    %p43 = por %p41, %p42
    %s45 = sadd.s32 %s44, 1
    %p48 = scmp.eq.s32.totalorder %s10, 1
    %p49 = scmp.ne.s32.totalorder %s44, %s46
    %p50 = scmp.eq.s32.totalorder %s10, 0
    %p51 = por %p49, %p50
    %p52 = scmp.ne.s32.totalorder %s44, %s46
    %p53 = scmp.eq.s32.totalorder %s15, 1
    %p54 = por %p52, %p53
    %p55 = scmp.ne.s32.totalorder %s46, %s47
    %p56 = scmp.eq.s32.totalorder %s15, 0
    %p57 = por %p55, %p56
    %p58 = scmp.ne.s32.totalorder %s46, %s47
    %p59 = scmp.eq.s32.totalorder %s16, 1
    %p60 = por %p58, %p59
    %p62 = scmp.ne.s32.totalorder %s47, %s61
    %p63 = scmp.eq.s32.totalorder %s16, 0
    %p64 = por %p62, %p63
    %s66 = sadd.s32 %s65, 1
    %p69 = scmp.eq.s32.totalorder %s10, 1
    %p70 = scmp.ne.s32.totalorder %s65, %s67
    %p71 = scmp.eq.s32.totalorder %s10, 0
    %p72 = por %p70, %p71
    %p73 = scmp.ne.s32.totalorder %s65, %s67
    %p74 = scmp.eq.s32.totalorder %s15, 1
    %p75 = por %p73, %p74
    %p76 = scmp.ne.s32.totalorder %s67, %s68
    %p77 = scmp.eq.s32.totalorder %s15, 0
    %p78 = por %p76, %p77
    %p79 = scmp.ne.s32.totalorder %s67, %s68
    %p80 = scmp.eq.s32.totalorder %s16, 1
    %p81 = por %p79, %p80
    %p83 = scmp.ne.s32.totalorder %s68, %s82
    %p84 = scmp.eq.s32.totalorder %s16, 0
    %p85 = por %p83, %p84
    %s87 = sadd.s32 %s86, 1
    %p90 = scmp.eq.s32.totalorder %s10, 1
    %p91 = scmp.ne.s32.totalorder %s86, %s88
    %p92 = scmp.eq.s32.totalorder %s10, 0
    %p93 = por %p91, %p92
    %p94 = scmp.ne.s32.totalorder %s86, %s88
    %p95 = scmp.eq.s32.totalorder %s15, 1
    %p96 = por %p94, %p95
    %p97 = scmp.ne.s32.totalorder %s88, %s89
    %p98 = scmp.eq.s32.totalorder %s15, 0
    %p99 = por %p97, %p98
    %p100 = scmp.ne.s32.totalorder %s88, %s89
    %p101 = scmp.eq.s32.totalorder %s16, 1
    %p102 = por %p100, %p101
    %p104 = scmp.ne.s32.totalorder %s89, %s103
    %p105 = scmp.eq.s32.totalorder %s16, 0
    %p106 = por %p104, %p105
    %s107 = ssub.s32 %s10, %s17
    %p108 = scmp.eq.s32.totalorder %s107, 0
    %s110 = sadd.s32 %s109, 1
    %s111 = scalar_select %p108, %s109, %s110
    %p114 = pneg %p108
    %p115 = scmp.eq.s32.totalorder %s10, 1
    %p116 = por %p114, %p115
    %p117 = scmp.ne.s32.totalorder %s109, %s112
    %p118 = scmp.eq.s32.totalorder %s10, 0
    %p119 = por %p117, %p118
    %p120 = scmp.ne.s32.totalorder %s109, %s112
    %p121 = scmp.eq.s32.totalorder %s15, 1
    %p122 = por %p120, %p121
    %p123 = scmp.ne.s32.totalorder %s112, %s113
    %p124 = scmp.eq.s32.totalorder %s15, 0
    %p125 = por %p123, %p124
    %p126 = scmp.ne.s32.totalorder %s112, %s113
    %p127 = scmp.eq.s32.totalorder %s16, 1
    %p128 = por %p126, %p127
    %p130 = scmp.ne.s32.totalorder %s113, %s129
    %p131 = scmp.eq.s32.totalorder %s16, 0
    %p132 = por %p130, %p131
    %p133 = scmp.le.s32.totalorder 1, %s10
    %p134 = scmp.lt.s32.totalorder %s10, 3
    %p135 = pnand %p133, %p134
    %p136 = pneg %p135
    // Predicated region
    $region9: #{tpu_custom_call.1} parent=5 // pred_check
      _
    $region10: #{tpu_custom_call.1} parent=5 // pred_check_branch
      %138 = sbr.rel (%p135) target = $region12
    $region11: #{tpu_custom_call.1} parent=5 // pred_region
      %s139 = ssub.s32 %s10, 1
      // Predicated region
      $region13: #{tpu_custom_call.1} parent=11 // pred_check
        %p140 = pneg %p57
      $region14: #{tpu_custom_call.1} parent=11 // pred_check_branch
        %142 = sbr.rel (%p140) target = $region16
      $region15: #{tpu_custom_call.1} parent=11 // pred_region
        _
      $region16: #{tpu_custom_call.1} parent=11 // pred_fallthru
        _
      // Predicated region
      $region17: #{tpu_custom_call.1} parent=11 // pred_check
        %p143 = pneg %p78
      $region18: #{tpu_custom_call.1} parent=11 // pred_check_branch
        %145 = sbr.rel (%p143) target = $region20
      $region19: #{tpu_custom_call.1} parent=11 // pred_region
        _
      $region20: #{tpu_custom_call.1} parent=11 // pred_fallthru
        _
      // Predicated region
      $region21: #{tpu_custom_call.1} parent=11 // pred_check
        %p146 = pneg %p99
      $region22: #{tpu_custom_call.1} parent=11 // pred_check_branch
        %148 = sbr.rel (%p146) target = $region24
      $region23: #{tpu_custom_call.1} parent=11 // pred_region
        _
      $region24: #{tpu_custom_call.1} parent=11 // pred_fallthru
        _
    $region12: #{tpu_custom_call.1} parent=5 // pred_fallthru
      _
    %p149 = scmp.lt.s32.totalorder %s10, 2
    // Predicated region
    $region25: #{tpu_custom_call.1} parent=5 // pred_check
      %p150 = pneg %p149
    $region26: #{tpu_custom_call.1} parent=5 // pred_check_branch
      %152 = sbr.rel (%p150) target = $region28
    $region27: #{tpu_custom_call.1} parent=5 // pred_region
      // Predicated region
      $region29: #{tpu_custom_call.1} parent=27 // pred_check
        %p153 = pneg %p30
      $region30: #{tpu_custom_call.1} parent=27 // pred_check_branch
        %155 = sbr.rel (%p153) target = $region32
      $region31: #{tpu_custom_call.1} parent=27 // pred_region
        %s156 = smul.u32 32, %s10
        %p157 = scmp.lt.s32.totalorder %s156, 63
        %s158 = scalar_select %p157, %s156, 63
        %s159 = smul.addr %s158, 8
        %s160 = scalar_lea.vmem %s0, %s159
        %s161 = smul.u32 32, %s10
      $region32: #{tpu_custom_call.1} parent=27 // pred_fallthru
        _
    $region28: #{tpu_custom_call.1} parent=5 // pred_fallthru
      _
    %p162 = scmp.le.s32.totalorder 1, %s10
    %p163 = scmp.lt.s32.totalorder %s10, 3
    %p164 = pnand %p162, %p163
    %p165 = pneg %p164
    // Predicated region
    $region33: #{tpu_custom_call.1} parent=5 // pred_check
      _
    $region34: #{tpu_custom_call.1} parent=5 // pred_check_branch
      %167 = sbr.rel (%p164) target = $region36
    $region35: #{tpu_custom_call.1} parent=5 // pred_region
      %s168 = ssub.s32 %s10, 1
      %s169 = smul.u32 32, %s15
      %p170 = scmp.lt.s32.totalorder %s169, 63
      %s171 = scalar_select %p170, %s169, 63
      %s172 = smul.addr %s171, 8
      %s173 = scalar_lea.vmem %s0, %s172
      %p174 = pneg %p36
      %p175 = pneg %p33
      %p176 = pneg %p57
      %p177 = pneg %p54
      %p178 = pneg %p78
      %p179 = pneg %p75
      %p180 = pneg %p99
      %p181 = pneg %p96
      %p182 = pneg %p125
      %p183 = pneg %p122
      %s184 = smul.u32 32, %s15
      %p185 = scmp.lt.s32.totalorder %s184, 63
      %s186 = scalar_select %p185, %s184, 63
      %s187 = smul.addr %s186, 8
      %s188 = scalar_lea.vmem %s4, %s187
      %s189 = smul.u32 32, %s15
      %p190 = scmp.lt.s32.totalorder %s189, 63
      %s191 = scalar_select %p190, %s189, 63
      %s192 = smul.addr %s191, 8
      %s193 = scalar_lea.vmem %s0, %s192
      %s194 = smul.u32 32, %s15
      %s195 = smul.u32 32, %s15
      %p196 = scmp.lt.s32.totalorder %s195, 63
      %s197 = scalar_select %p196, %s195, 63
      %s198 = smul.addr %s197, 8
      %s199 = scalar_lea.vmem %s4, %s198
      %s200 = smul.u32 32, %s15
      %v201 = vld [vmem:[%s193] sm:$0xff]
      %v202 = vld [vmem:[%s193 + $0x8] sm:$0xff]
      %v203 = vld [vmem:[%s193 + $0x10] sm:$0xff]
      %v204 = vld [vmem:[%s193 + $0x18] sm:$0xff]
      %v205 = vld [vmem:[%s193 + $0x20] sm:$0xff]
      %v206 = vld [vmem:[%s193 + $0x28] sm:$0xff]
      %v207 = vld [vmem:[%s193 + $0x30] sm:$0xff]
      %v208 = vld [vmem:[%s193 + $0x38] sm:$0xff]
      %v209 = vld [vmem:[%s193 + $0x40] sm:$0xff]
      %v210 = vld [vmem:[%s193 + $0x48] sm:$0xff]
      %v211 = vld [vmem:[%s193 + $0x50] sm:$0xff]
      %v212 = vld [vmem:[%s193 + $0x58] sm:$0xff]
      %v213 = vld [vmem:[%s193 + $0x60] sm:$0xff]
      %v214 = vld [vmem:[%s193 + $0x68] sm:$0xff]
      %v215 = vld [vmem:[%s193 + $0x70] sm:$0xff]
      %v216 = vld [vmem:[%s193 + $0x78] sm:$0xff]
      %v217 = vld [vmem:[%s193 + $0x80] sm:$0xff]
      %v218 = vld [vmem:[%s193 + $0x88] sm:$0xff]
      %v219 = vld [vmem:[%s193 + $0x90] sm:$0xff]
      %v220 = vld [vmem:[%s193 + $0x98] sm:$0xff]
      %v221 = vld [vmem:[%s193 + $0xa0] sm:$0xff]
      %v222 = vld [vmem:[%s193 + $0xa8] sm:$0xff]
      %v223 = vld [vmem:[%s193 + $0xb0] sm:$0xff]
      %v224 = vld [vmem:[%s193 + $0xb8] sm:$0xff]
      %v225 = vld [vmem:[%s193 + $0xc0] sm:$0xff]
      %v226 = vld [vmem:[%s193 + $0xc8] sm:$0xff]
      %v227 = vld [vmem:[%s193 + $0xd0] sm:$0xff]
      %v228 = vld [vmem:[%s193 + $0xd8] sm:$0xff]
      %v229 = vld [vmem:[%s193 + $0xe0] sm:$0xff]
      %v230 = vld [vmem:[%s193 + $0xe8] sm:$0xff]
      %v231 = vld [vmem:[%s193 + $0xf0] sm:$0xff]
      %v232 = vld [vmem:[%s193 + $0xf8] sm:$0xff]
      %v233 = vld [vmem:[%s1] sm:$0xff]
      %v234 = vld [vmem:[%s1 + $0x8] sm:$0xff]
      %v235 = vld [vmem:[%s1 + $0x10] sm:$0xff]
      %v236 = vld [vmem:[%s1 + $0x18] sm:$0xff]
      %v237 = vld [vmem:[%s1 + $0x20] sm:$0xf]
      %vm238 = vcmask 293888
      %v240 = vsel %vm238, %v201, 0
      %v243 = vsel %vm238, %v202, 0
      %v246 = vsel %vm238, %v203, 0
      %v249 = vsel %vm238, %v204, 0
      %v252 = vsel %vm238, %v205, 0
      %v255 = vsel %vm238, %v206, 0
      %v258 = vsel %vm238, %v207, 0
      %v261 = vsel %vm238, %v208, 0
      %v264 = vsel %vm238, %v209, 0
      %v267 = vsel %vm238, %v210, 0
      %v270 = vsel %vm238, %v211, 0
      %v273 = vsel %vm238, %v212, 0
      %v276 = vsel %vm238, %v213, 0
      %v279 = vsel %vm238, %v214, 0
      %v282 = vsel %vm238, %v215, 0
      %v285 = vsel %vm238, %v216, 0
      %v288 = vsel %vm238, %v217, 0
      %v291 = vsel %vm238, %v218, 0
      %v294 = vsel %vm238, %v219, 0
      %v297 = vsel %vm238, %v220, 0
      %v300 = vsel %vm238, %v221, 0
      %v303 = vsel %vm238, %v222, 0
      %v306 = vsel %vm238, %v223, 0
      %v309 = vsel %vm238, %v224, 0
      %v312 = vsel %vm238, %v225, 0
      %v315 = vsel %vm238, %v226, 0
      %v318 = vsel %vm238, %v227, 0
      %v321 = vsel %vm238, %v228, 0
      %v324 = vsel %vm238, %v229, 0
      %v327 = vsel %vm238, %v230, 0
      %v330 = vsel %vm238, %v231, 0
      %v333 = vsel %vm238, %v232, 0
      %vm335 = vcmask 1043456
      %v337 = vsel %vm335, %v237, 0
      %339 = vmatpush.msra.mxu0 0.0
      %340 = vmatpush.msra.mxu0 0.0
      %341 = vmatpush.msra.mxu0 0.0
      %342 = vmatpush.msra.mxu0 0.0
      %343 = vmatpush.msra.mxu0 0.0
      %344 = vmatpush.msra.mxu0 0.0
      %345 = vmatpush.msra.mxu0 0.0
      %346 = vmatpush.msra.mxu0 0.0
      %347 = vmatpush.msra.mxu0 0.0
      %348 = vmatpush.msra.mxu0 0.0
      %349 = vmatpush.msra.mxu0 0.0
      %350 = vmatpush.msra.mxu0 %v337
      %351 = vmatpush.msra.mxu0 %v236
      %352 = vmatpush.msra.mxu0 %v235
      %353 = vmatpush.msra.mxu0 %v234
      %354 = vmatpush.msra.mxu0 %v233
      %355 = vmatmul.f32.gmra.mxu0 %v240
      %v356 = vpop.f32.mrf.mxu0
      %v357 = vadd.f32 0.0, %v356
      %358 = vmatmul.f32.gmra.mxu0 %v243
      %v359 = vpop.f32.mrf.mxu0
      %v360 = vadd.f32 0.0, %v359
      %361 = vmatmul.f32.gmra.mxu0 %v246
      %v362 = vpop.f32.mrf.mxu0
      %v363 = vadd.f32 0.0, %v362
      %364 = vmatmul.f32.gmra.mxu0 %v249
      %v365 = vpop.f32.mrf.mxu0
      %v366 = vadd.f32 0.0, %v365
      %367 = vmatmul.f32.gmra.mxu0 %v252
      %v368 = vpop.f32.mrf.mxu0
      %v369 = vadd.f32 0.0, %v368
      %370 = vmatmul.f32.gmra.mxu0 %v255
      %v371 = vpop.f32.mrf.mxu0
      %v372 = vadd.f32 0.0, %v371
      %373 = vmatmul.f32.gmra.mxu0 %v258
      %v374 = vpop.f32.mrf.mxu0
      %v375 = vadd.f32 0.0, %v374
      %376 = vmatmul.f32.gmra.mxu0 %v261
      %v377 = vpop.f32.mrf.mxu0
      %v378 = vadd.f32 0.0, %v377
      %379 = vmatmul.f32.gmra.mxu0 %v264
      %v380 = vpop.f32.mrf.mxu0
      %v381 = vadd.f32 0.0, %v380
      %382 = vmatmul.f32.gmra.mxu0 %v267
      %v383 = vpop.f32.mrf.mxu0
      %v384 = vadd.f32 0.0, %v383
      %385 = vmatmul.f32.gmra.mxu0 %v270
      %v386 = vpop.f32.mrf.mxu0
      %v387 = vadd.f32 0.0, %v386
      %388 = vmatmul.f32.gmra.mxu0 %v273
      %v389 = vpop.f32.mrf.mxu0
      %v390 = vadd.f32 0.0, %v389
      %391 = vmatmul.f32.gmra.mxu0 %v276
      %v392 = vpop.f32.mrf.mxu0
      %v393 = vadd.f32 0.0, %v392
      %394 = vmatmul.f32.gmra.mxu0 %v279
      %v395 = vpop.f32.mrf.mxu0
      %v396 = vadd.f32 0.0, %v395
      %397 = vmatmul.f32.gmra.mxu0 %v282
      %v398 = vpop.f32.mrf.mxu0
      %v399 = vadd.f32 0.0, %v398
      %400 = vmatmul.f32.gmra.mxu0 %v285
      %v401 = vpop.f32.mrf.mxu0
      %v402 = vadd.f32 0.0, %v401
      %403 = vmatmul.f32.gmra.mxu0 %v288
      %v404 = vpop.f32.mrf.mxu0
      %v405 = vadd.f32 0.0, %v404
      %406 = vmatmul.f32.gmra.mxu0 %v291
      %v407 = vpop.f32.mrf.mxu0
      %v408 = vadd.f32 0.0, %v407
      %409 = vmatmul.f32.gmra.mxu0 %v294
      %v410 = vpop.f32.mrf.mxu0
      %v411 = vadd.f32 0.0, %v410
      %412 = vmatmul.f32.gmra.mxu0 %v297
      %v413 = vpop.f32.mrf.mxu0
      %v414 = vadd.f32 0.0, %v413
      %415 = vmatmul.f32.gmra.mxu0 %v300
      %v416 = vpop.f32.mrf.mxu0
      %v417 = vadd.f32 0.0, %v416
      %418 = vmatmul.f32.gmra.mxu0 %v303
      %v419 = vpop.f32.mrf.mxu0
      %v420 = vadd.f32 0.0, %v419
      %421 = vmatmul.f32.gmra.mxu0 %v306
      %v422 = vpop.f32.mrf.mxu0
      %v423 = vadd.f32 0.0, %v422
      %424 = vmatmul.f32.gmra.mxu0 %v309
      %v425 = vpop.f32.mrf.mxu0
      %v426 = vadd.f32 0.0, %v425
      %427 = vmatmul.f32.gmra.mxu0 %v312
      %v428 = vpop.f32.mrf.mxu0
      %v429 = vadd.f32 0.0, %v428
      %430 = vmatmul.f32.gmra.mxu0 %v315
      %v431 = vpop.f32.mrf.mxu0
      %v432 = vadd.f32 0.0, %v431
      %433 = vmatmul.f32.gmra.mxu0 %v318
      %v434 = vpop.f32.mrf.mxu0
      %v435 = vadd.f32 0.0, %v434
      %436 = vmatmul.f32.gmra.mxu0 %v321
      %v437 = vpop.f32.mrf.mxu0
      %v438 = vadd.f32 0.0, %v437
      %439 = vmatmul.f32.gmra.mxu0 %v324
      %v440 = vpop.f32.mrf.mxu0
      %v441 = vadd.f32 0.0, %v440
      %442 = vmatmul.f32.gmra.mxu0 %v327
      %v443 = vpop.f32.mrf.mxu0
      %v444 = vadd.f32 0.0, %v443
      %445 = vmatmul.f32.gmra.mxu0 %v330
      %v446 = vpop.f32.mrf.mxu0
      %v447 = vadd.f32 0.0, %v446
      %448 = vmatmul.f32.gmra.mxu0 %v333
      %v449 = vpop.f32.mrf.mxu0
      %v450 = vadd.f32 0.0, %v449
      %451 = vdwg.mxu0
      %v452 = vld [vmem:[%s2] sm:$0x1]
      %v454 = vperm.slane %v452, 0
      %v456 = vmul.f32 %v357, %v454
      %v457 = vmul.f32 %v360, %v454
      %v458 = vmul.f32 %v363, %v454
      %v459 = vmul.f32 %v366, %v454
      %v460 = vmul.f32 %v369, %v454
      %v461 = vmul.f32 %v372, %v454
      %v462 = vmul.f32 %v375, %v454
      %v463 = vmul.f32 %v378, %v454
      %v464 = vmul.f32 %v381, %v454
      %v465 = vmul.f32 %v384, %v454
      %v466 = vmul.f32 %v387, %v454
      %v467 = vmul.f32 %v390, %v454
      %v468 = vmul.f32 %v393, %v454
      %v469 = vmul.f32 %v396, %v454
      %v470 = vmul.f32 %v399, %v454
      %v471 = vmul.f32 %v402, %v454
      %v472 = vmul.f32 %v405, %v454
      %v473 = vmul.f32 %v408, %v454
      %v474 = vmul.f32 %v411, %v454
      %v475 = vmul.f32 %v414, %v454
      %v476 = vmul.f32 %v417, %v454
      %v477 = vmul.f32 %v420, %v454
      %v478 = vmul.f32 %v423, %v454
      %v479 = vmul.f32 %v426, %v454
      %v480 = vmul.f32 %v429, %v454
      %v481 = vmul.f32 %v432, %v454
      %v482 = vmul.f32 %v435, %v454
      %v483 = vmul.f32 %v438, %v454
      %v484 = vmul.f32 %v441, %v454
      %v485 = vmul.f32 %v444, %v454
      %v486 = vmul.f32 %v447, %v454
      %v487 = vmul.f32 %v450, %v454
      %v488 = vld [vmem:[%s3] sm:$0x1]
      %v490 = vperm.slane %v488, 0
      %v492 = vadd.f32 %v456, %v490
      %v493 = vadd.f32 %v457, %v490
      %v494 = vadd.f32 %v458, %v490
      %v495 = vadd.f32 %v459, %v490
      %v496 = vadd.f32 %v460, %v490
      %v497 = vadd.f32 %v461, %v490
      %v498 = vadd.f32 %v462, %v490
      %v499 = vadd.f32 %v463, %v490
      %v500 = vadd.f32 %v464, %v490
      %v501 = vadd.f32 %v465, %v490
      %v502 = vadd.f32 %v466, %v490
      %v503 = vadd.f32 %v467, %v490
      %v504 = vadd.f32 %v468, %v490
      %v505 = vadd.f32 %v469, %v490
      %v506 = vadd.f32 %v470, %v490
      %v507 = vadd.f32 %v471, %v490
      %v508 = vadd.f32 %v472, %v490
      %v509 = vadd.f32 %v473, %v490
      %v510 = vadd.f32 %v474, %v490
      %v511 = vadd.f32 %v475, %v490
      %v512 = vadd.f32 %v476, %v490
      %v513 = vadd.f32 %v477, %v490
      %v514 = vadd.f32 %v478, %v490
      %v515 = vadd.f32 %v479, %v490
      %v516 = vadd.f32 %v480, %v490
      %v517 = vadd.f32 %v481, %v490
      %v518 = vadd.f32 %v482, %v490
      %v519 = vadd.f32 %v483, %v490
      %v520 = vadd.f32 %v484, %v490
      %v521 = vadd.f32 %v485, %v490
      %v522 = vadd.f32 %v486, %v490
      %v523 = vadd.f32 %v487, %v490
      %vm524 = vcmp.gt.f32.partialorder %v492, 0.0
      %vm525 = vcmp.gt.f32.partialorder %v493, 0.0
      %vm526 = vcmp.gt.f32.partialorder %v494, 0.0
      %vm527 = vcmp.gt.f32.partialorder %v495, 0.0
      %vm528 = vcmp.gt.f32.partialorder %v496, 0.0
      %vm529 = vcmp.gt.f32.partialorder %v497, 0.0
      %vm530 = vcmp.gt.f32.partialorder %v498, 0.0
      %vm531 = vcmp.gt.f32.partialorder %v499, 0.0
      %vm532 = vcmp.gt.f32.partialorder %v500, 0.0
      %vm533 = vcmp.gt.f32.partialorder %v501, 0.0
      %vm534 = vcmp.gt.f32.partialorder %v502, 0.0
      %vm535 = vcmp.gt.f32.partialorder %v503, 0.0
      %vm536 = vcmp.gt.f32.partialorder %v504, 0.0
      %vm537 = vcmp.gt.f32.partialorder %v505, 0.0
      %vm538 = vcmp.gt.f32.partialorder %v506, 0.0
      %vm539 = vcmp.gt.f32.partialorder %v507, 0.0
      %vm540 = vcmp.gt.f32.partialorder %v508, 0.0
      %vm541 = vcmp.gt.f32.partialorder %v509, 0.0
      %vm542 = vcmp.gt.f32.partialorder %v510, 0.0
      %vm543 = vcmp.gt.f32.partialorder %v511, 0.0
      %vm544 = vcmp.gt.f32.partialorder %v512, 0.0
      %vm545 = vcmp.gt.f32.partialorder %v513, 0.0
      %vm546 = vcmp.gt.f32.partialorder %v514, 0.0
      %vm547 = vcmp.gt.f32.partialorder %v515, 0.0
      %vm548 = vcmp.gt.f32.partialorder %v516, 0.0
      %vm549 = vcmp.gt.f32.partialorder %v517, 0.0
      %vm550 = vcmp.gt.f32.partialorder %v518, 0.0
      %vm551 = vcmp.gt.f32.partialorder %v519, 0.0
      %vm552 = vcmp.gt.f32.partialorder %v520, 0.0
      %vm553 = vcmp.gt.f32.partialorder %v521, 0.0
      %vm554 = vcmp.gt.f32.partialorder %v522, 0.0
      %vm555 = vcmp.gt.f32.partialorder %v523, 0.0
      %v556 = vmin.f32 %v492, 0.0
      %v557 = vmin.f32 %v493, 0.0
      %v558 = vmin.f32 %v494, 0.0
      %v559 = vmin.f32 %v495, 0.0
      %v560 = vmin.f32 %v496, 0.0
      %v561 = vmin.f32 %v497, 0.0
      %v562 = vmin.f32 %v498, 0.0
      %v563 = vmin.f32 %v499, 0.0
      %v564 = vmin.f32 %v500, 0.0
      %v565 = vmin.f32 %v501, 0.0
      %v566 = vmin.f32 %v502, 0.0
      %v567 = vmin.f32 %v503, 0.0
      %v568 = vmin.f32 %v504, 0.0
      %v569 = vmin.f32 %v505, 0.0
      %v570 = vmin.f32 %v506, 0.0
      %v571 = vmin.f32 %v507, 0.0
      %v572 = vmin.f32 %v508, 0.0
      %v573 = vmin.f32 %v509, 0.0
      %v574 = vmin.f32 %v510, 0.0
      %v575 = vmin.f32 %v511, 0.0
      %v576 = vmin.f32 %v512, 0.0
      %v577 = vmin.f32 %v513, 0.0
      %v578 = vmin.f32 %v514, 0.0
      %v579 = vmin.f32 %v515, 0.0
      %v580 = vmin.f32 %v516, 0.0
      %v581 = vmin.f32 %v517, 0.0
      %v582 = vmin.f32 %v518, 0.0
      %v583 = vmin.f32 %v519, 0.0
      %v584 = vmin.f32 %v520, 0.0
      %v585 = vmin.f32 %v521, 0.0
      %v586 = vmin.f32 %v522, 0.0
      %v587 = vmin.f32 %v523, 0.0
      %v588 = vmul.f32 %v556, 1.442695
      %v589 = vpow.pop %v588
      %v590 = vmul.f32 %v557, 1.442695
      %v591 = vpow.pop %v590
      %v592 = vmul.f32 %v558, 1.442695
      %v593 = vpow.pop %v592
      %v594 = vmul.f32 %v559, 1.442695
      %v595 = vpow.pop %v594
      %v596 = vmul.f32 %v560, 1.442695
      %v597 = vpow.pop %v596
      %v598 = vmul.f32 %v561, 1.442695
      %v599 = vpow.pop %v598
      %v600 = vmul.f32 %v562, 1.442695
      %v601 = vpow.pop %v600
      %v602 = vmul.f32 %v563, 1.442695
      %v603 = vpow.pop %v602
      %v604 = vmul.f32 %v564, 1.442695
      %v605 = vpow.pop %v604
      %v606 = vmul.f32 %v565, 1.442695
      %v607 = vpow.pop %v606
      %v608 = vmul.f32 %v566, 1.442695
      %v609 = vpow.pop %v608
      %v610 = vmul.f32 %v567, 1.442695
      %v611 = vpow.pop %v610
      %v612 = vmul.f32 %v568, 1.442695
      %v613 = vpow.pop %v612
      %v614 = vmul.f32 %v569, 1.442695
      %v615 = vpow.pop %v614
      %v616 = vmul.f32 %v570, 1.442695
      %v617 = vpow.pop %v616
      %v618 = vmul.f32 %v571, 1.442695
      %v619 = vpow.pop %v618
      %v620 = vmul.f32 %v572, 1.442695
      %v621 = vpow.pop %v620
      %v622 = vmul.f32 %v573, 1.442695
      %v623 = vpow.pop %v622
      %v624 = vmul.f32 %v574, 1.442695
      %v625 = vpow.pop %v624
      %v626 = vmul.f32 %v575, 1.442695
      %v627 = vpow.pop %v626
      %v628 = vmul.f32 %v576, 1.442695
      %v629 = vpow.pop %v628
      %v630 = vmul.f32 %v577, 1.442695
      %v631 = vpow.pop %v630
      %v632 = vmul.f32 %v578, 1.442695
      %v633 = vpow.pop %v632
      %v634 = vmul.f32 %v579, 1.442695
      %v635 = vpow.pop %v634
      %v636 = vmul.f32 %v580, 1.442695
      %v637 = vpow.pop %v636
      %v638 = vmul.f32 %v581, 1.442695
      %v639 = vpow.pop %v638
      %v640 = vmul.f32 %v582, 1.442695
      %v641 = vpow.pop %v640
      %v642 = vmul.f32 %v583, 1.442695
      %v643 = vpow.pop %v642
      %v644 = vmul.f32 %v584, 1.442695
      %v645 = vpow.pop %v644
      %v646 = vmul.f32 %v585, 1.442695
      %v647 = vpow.pop %v646
      %v648 = vmul.f32 %v586, 1.442695
      %v649 = vpow.pop %v648
      %v650 = vmul.f32 %v587, 1.442695
      %v651 = vpow.pop %v650
      %v652 = vsub.f32 %v589, 1.0
      %v653 = vsub.f32 %v591, 1.0
      %v654 = vsub.f32 %v593, 1.0
      %v655 = vsub.f32 %v595, 1.0
      %v656 = vsub.f32 %v597, 1.0
      %v657 = vsub.f32 %v599, 1.0
      %v658 = vsub.f32 %v601, 1.0
      %v659 = vsub.f32 %v603, 1.0
      %v660 = vsub.f32 %v605, 1.0
      %v661 = vsub.f32 %v607, 1.0
      %v662 = vsub.f32 %v609, 1.0
      %v663 = vsub.f32 %v611, 1.0
      %v664 = vsub.f32 %v613, 1.0
      %v665 = vsub.f32 %v615, 1.0
      %v666 = vsub.f32 %v617, 1.0
      %v667 = vsub.f32 %v619, 1.0
      %v668 = vsub.f32 %v621, 1.0
      %v669 = vsub.f32 %v623, 1.0
      %v670 = vsub.f32 %v625, 1.0
      %v671 = vsub.f32 %v627, 1.0
      %v672 = vsub.f32 %v629, 1.0
      %v673 = vsub.f32 %v631, 1.0
      %v674 = vsub.f32 %v633, 1.0
      %v675 = vsub.f32 %v635, 1.0
      %v676 = vsub.f32 %v637, 1.0
      %v677 = vsub.f32 %v639, 1.0
      %v678 = vsub.f32 %v641, 1.0
      %v679 = vsub.f32 %v643, 1.0
      %v680 = vsub.f32 %v645, 1.0
      %v681 = vsub.f32 %v647, 1.0
      %v682 = vsub.f32 %v649, 1.0
      %v683 = vsub.f32 %v651, 1.0
      %v684 = vsel %vm524, %v492, %v652
      %v685 = vsel %vm525, %v493, %v653
      %v686 = vsel %vm526, %v494, %v654
      %v687 = vsel %vm527, %v495, %v655
      %v688 = vsel %vm528, %v496, %v656
      %v689 = vsel %vm529, %v497, %v657
      %v690 = vsel %vm530, %v498, %v658
      %v691 = vsel %vm531, %v499, %v659
      %v692 = vsel %vm532, %v500, %v660
      %v693 = vsel %vm533, %v501, %v661
      %v694 = vsel %vm534, %v502, %v662
      %v695 = vsel %vm535, %v503, %v663
      %v696 = vsel %vm536, %v504, %v664
      %v697 = vsel %vm537, %v505, %v665
      %v698 = vsel %vm538, %v506, %v666
      %v699 = vsel %vm539, %v507, %v667
      %v700 = vsel %vm540, %v508, %v668
      %v701 = vsel %vm541, %v509, %v669
      %v702 = vsel %vm542, %v510, %v670
      %v703 = vsel %vm543, %v511, %v671
      %v704 = vsel %vm544, %v512, %v672
      %v705 = vsel %vm545, %v513, %v673
      %v706 = vsel %vm546, %v514, %v674
      %v707 = vsel %vm547, %v515, %v675
      %v708 = vsel %vm548, %v516, %v676
      %v709 = vsel %vm549, %v517, %v677
      %v710 = vsel %vm550, %v518, %v678
      %v711 = vsel %vm551, %v519, %v679
      %v712 = vsel %vm552, %v520, %v680
      %v713 = vsel %vm553, %v521, %v681
      %v714 = vsel %vm554, %v522, %v682
      %v715 = vsel %vm555, %v523, %v683
      %vm716 = vcmask 64512
      %717 = vst.msk [vmem:[%s199] sm:$0xff] %vm716, %v684
      %718 = vst.msk [vmem:[%s199 + $0x8] sm:$0xff] %vm716, %v685
      %719 = vst.msk [vmem:[%s199 + $0x10] sm:$0xff] %vm716, %v686
      %720 = vst.msk [vmem:[%s199 + $0x18] sm:$0xff] %vm716, %v687
      %721 = vst.msk [vmem:[%s199 + $0x20] sm:$0xff] %vm716, %v688
      %722 = vst.msk [vmem:[%s199 + $0x28] sm:$0xff] %vm716, %v689
      %723 = vst.msk [vmem:[%s199 + $0x30] sm:$0xff] %vm716, %v690
      %724 = vst.msk [vmem:[%s199 + $0x38] sm:$0xff] %vm716, %v691
      %725 = vst.msk [vmem:[%s199 + $0x40] sm:$0xff] %vm716, %v692
      %726 = vst.msk [vmem:[%s199 + $0x48] sm:$0xff] %vm716, %v693
      %727 = vst.msk [vmem:[%s199 + $0x50] sm:$0xff] %vm716, %v694
      %728 = vst.msk [vmem:[%s199 + $0x58] sm:$0xff] %vm716, %v695
      %729 = vst.msk [vmem:[%s199 + $0x60] sm:$0xff] %vm716, %v696
      %730 = vst.msk [vmem:[%s199 + $0x68] sm:$0xff] %vm716, %v697
      %731 = vst.msk [vmem:[%s199 + $0x70] sm:$0xff] %vm716, %v698
      %732 = vst.msk [vmem:[%s199 + $0x78] sm:$0xff] %vm716, %v699
      %733 = vst.msk [vmem:[%s199 + $0x80] sm:$0xff] %vm716, %v700
      %734 = vst.msk [vmem:[%s199 + $0x88] sm:$0xff] %vm716, %v701
      %735 = vst.msk [vmem:[%s199 + $0x90] sm:$0xff] %vm716, %v702
      %736 = vst.msk [vmem:[%s199 + $0x98] sm:$0xff] %vm716, %v703
      %737 = vst.msk [vmem:[%s199 + $0xa0] sm:$0xff] %vm716, %v704
      %738 = vst.msk [vmem:[%s199 + $0xa8] sm:$0xff] %vm716, %v705
      %739 = vst.msk [vmem:[%s199 + $0xb0] sm:$0xff] %vm716, %v706
      %740 = vst.msk [vmem:[%s199 + $0xb8] sm:$0xff] %vm716, %v707
      %741 = vst.msk [vmem:[%s199 + $0xc0] sm:$0xff] %vm716, %v708
      %742 = vst.msk [vmem:[%s199 + $0xc8] sm:$0xff] %vm716, %v709
      %743 = vst.msk [vmem:[%s199 + $0xd0] sm:$0xff] %vm716, %v710
      %744 = vst.msk [vmem:[%s199 + $0xd8] sm:$0xff] %vm716, %v711
      %745 = vst.msk [vmem:[%s199 + $0xe0] sm:$0xff] %vm716, %v712
      %746 = vst.msk [vmem:[%s199 + $0xe8] sm:$0xff] %vm716, %v713
      %747 = vst.msk [vmem:[%s199 + $0xf0] sm:$0xff] %vm716, %v714
      %748 = vst.msk [vmem:[%s199 + $0xf8] sm:$0xff] %vm716, %v715
      %s749 = smul.u32 32, %s15
      %p750 = scmp.lt.s32.totalorder %s749, 63
      %s751 = scalar_select %p750, %s749, 63
      %s752 = smul.addr %s751, 8
      %s753 = scalar_lea.vmem %s4, %s752
      // Predicated region
      $region37: #{tpu_custom_call.1} parent=35 // pred_check
        %p754 = pneg %p122
      $region38: #{tpu_custom_call.1} parent=35 // pred_check_branch
        %756 = sbr.rel (%p754) target = $region40
      $region39: #{tpu_custom_call.1} parent=35 // pred_region
        %s757 = smul.u32 32, %s15
      $region40: #{tpu_custom_call.1} parent=35 // pred_fallthru
        _
    $region36: #{tpu_custom_call.1} parent=5 // pred_fallthru
      _
    %p758 = scmp.le.s32.totalorder 2, %s10
    // Predicated region
    $region41: #{tpu_custom_call.1} parent=5 // pred_check
      %p759 = pneg %p758
    $region42: #{tpu_custom_call.1} parent=5 // pred_check_branch
      %761 = sbr.rel (%p759) target = $region44
    $region43: #{tpu_custom_call.1} parent=5 // pred_region
      %s762 = ssub.s32 %s10, 2
      // Predicated region
      $region45: #{tpu_custom_call.1} parent=43 // pred_check
        %p763 = pneg %p128
      $region46: #{tpu_custom_call.1} parent=43 // pred_check_branch
        %765 = sbr.rel (%p763) target = $region48
      $region47: #{tpu_custom_call.1} parent=43 // pred_region
        %s766 = smul.u32 32, %s16
        %p767 = scmp.lt.s32.totalorder %s766, 63
        %s768 = scalar_select %p767, %s766, 63
        %s769 = smul.addr %s768, 8
        %s770 = scalar_lea.vmem %s4, %s769
      $region48: #{tpu_custom_call.1} parent=43 // pred_fallthru
        _
    $region44: #{tpu_custom_call.1} parent=5 // pred_fallthru
      _
  $region6: #{tpu_custom_call.1} parent=0 // loop_footer
    %s14 = sadd.s32 1, %s10
  $region7: #{tpu_custom_call.1} parent=0 // loop_footer_branch
    %9 = sbr.rel target = $region3
  $region8: #{tpu_custom_call.1} parent=0 // loop_exit
    _

</llo_original>
